<compile_context>
chip_gen: v6e
topology: v6e:2x2x1
jax: 0.10.0
libtpu: 0.0.40
codegen_flags: <defaults>
</compile_context>

<pallas_src>
import functools

import jax
import jax.numpy as jnp
from jax.experimental import pallas as pl
from jax.experimental.pallas import tpu as pltpu


def _round_up(x: int, m: int) -> int:
    return ((x + m - 1) // m) * m


def _vmem_capacity_bytes() -> int:
    """Per-TensorCore VMEM capacity; conservative fallback if the query fails."""
    try:
        return int(pltpu.get_tpu_info().vmem_capacity_bytes)
    except Exception:
        return 64 * 1024 * 1024  # v7x per-core figure (smallest across v5e/v6e/v7x)


def _siren_kernel(x_ref, w_ref, b_ref, o_ref, *, activation: str):
    # x_ref: (tm, K)  w_ref: (K, tn)  b_ref: (1, tn)  o_ref: (tm, tn)
    x = x_ref[...]
    w = w_ref[...]
    if x.dtype != w.dtype:
        x = x.astype(w.dtype)  # in-VMEM cast (VPU, free-ish): MXU runs at W's dtype
    y = jnp.dot(x, w, preferred_element_type=jnp.float32)   # f32 accumulation
    y = y + b_ref[...]                                       # f32 epilogue
    if activation == "sine":
        y = jnp.sin(y)                                       # f32 transcendental
    o_ref[...] = y.astype(o_ref.dtype)


def prepare_siren_params(weight, bias, dtype=jnp.bfloat16):
    """One-time conversion from PyTorch nn.Linear layout to the kernel layout.

    weight: [N, K] (PyTorch layout)   bias: [N]
    Returns (w_t, b2, n_out):
      w_t: [K, N_pad] in `dtype` (pre-transposed, N zero-padded to x128;
           K left unpadded so x never has to be padded/rewritten in HBM)
      b2:  [1, N_pad] float32
    Call once outside the hot loop (no per-call transpose / cast).
    """
    weight = jnp.asarray(weight)
    bias = jnp.asarray(bias)
    n_out, k_in = weight.shape
    n_pad = _round_up(n_out, 128)
    w_t = jnp.zeros((k_in, n_pad), dtype).at[:, :n_out].set(weight.T.astype(dtype))
    b2 = jnp.zeros((1, n_pad), jnp.float32).at[0, :n_out].set(
        bias.astype(jnp.float32))
    return w_t, b2, n_out


def _select_tiles(M, K, N_pad, x_item, w_item, out_item, budget):
    """Budget-driven tile selection. Returns (tm, tn, weight_buffer_count)."""
    q = 16 if min(x_item, w_item, out_item) <= 2 else 8   # sublane quantum
    min_tm = max(q, 128)
    tm0 = min(1024, _round_up(M, q))

    def need(tm_, tn_, w_bufs):
        return (2 * tm_ * K * x_item                       # x (double-buffered)
                + w_bufs * (K * tn_ * w_item + tn_ * 4)    # weight + bias
                + 2 * tm_ * tn_ * out_item)                # output (double-buffered)

    def shrink_tm(tm_, tn_, w_bufs):
        while need(tm_, tn_, w_bufs) > budget and tm_ > min_tm:
            tm_ = max(min_tm, _round_up(tm_ // 2, q))
        return tm_

    # Preferred: whole (padded) weight resident + single-buffered; x read once.
    tm = shrink_tm(tm0, N_pad, 1)
    if need(tm, N_pad, 1) <= budget:
        tn, w_bufs = N_pad, 1
    else:
        # Fallback: tile N. M stays the outer grid axis so x is still read once;
        # only the (small) weight is re-streamed per M tile.
        tn, w_bufs = 128, 2
        for cand in range(N_pad, 127, -128):
            if N_pad % cand:
                continue
            tm_c = shrink_tm(tm0, cand, 2)
            if need(tm_c, cand, 2) <= budget:
                tn, tm = cand, tm_c
                break
        else:
            tm = shrink_tm(tm0, 128, 2)

    # Give megacore / v7x's two TensorCores at least two M tiles when there is
    # enough work to amortize the extra grid step.
    if pl.cdiv(M, tm) < 2 and M >= 512:
        tm = _round_up(pl.cdiv(M, 2), q)
    return tm, tn, w_bufs


def siren_forward(x, w_t, b2, n_out, *, activation: str = "identity",
                  out_dtype=jnp.float32, full_output: bool = False):
    """Pallas implementation of Siren.forward: activation(x @ W.T + b).

    x:   [..., K]     any float dtype (bf16 input halves the streamed HBM read)
    w_t: [K, N_pad]   from prepare_siren_params (its dtype = MXU compute dtype)
    b2:  [1, N_pad]   float32
    Returns [..., n_out] in out_dtype, or [..., N_pad] if full_output=True
    (avoids the post-kernel N slice when chaining layers).
    """
    if activation not in ("identity", "sine"):
        raise ValueError(f"unsupported activation: {activation}")

    K, N_pad = w_t.shape
    if x.shape[-1] != K:
        raise ValueError(f"x last dim {x.shape[-1]} != weight input dim {K}")
    orig_shape = x.shape
    x2 = x.reshape(-1, K)
    M = x2.shape[0]

    x_item = jnp.dtype(x2.dtype).itemsize
    w_item = jnp.dtype(w_t.dtype).itemsize
    out_item = jnp.dtype(out_dtype).itemsize

    capacity = _vmem_capacity_bytes()
    budget = (capacity * 3) // 4        # tile-selection budget (headroom)
    vmem_limit = (capacity * 7) // 8    # scoped limit: >= budget, < capacity

    tm, tn, w_bufs = _select_tiles(M, K, N_pad, x_item, w_item, out_item, budget)
    num_m = pl.cdiv(M, tm)              # partial last M block handled by masking
    num_n = N_pad // tn

    w_reads = 1 if num_n == 1 else num_m
    cost = pl.CostEstimate(
        flops=2 * M * K * N_pad,
        transcendentals=(M * N_pad) if activation == "sine" else 0,
        bytes_accessed=(M * K * x_item
                        + w_reads * (K * N_pad * w_item + N_pad * 4)
                        + M * N_pad * out_item),
    )
    kernel = functools.partial(_siren_kernel, activation=activation)

    def make_call(single_buffer_w: bool):
        if num_n == 1:
            grid = (num_m,)
            x_spec = pl.BlockSpec((tm, K), lambda i: (i, 0))      # streams once
            if single_buffer_w:
                # Weight/bias are constant across the grid: one buffer suffices.
                w_spec = pl.BlockSpec((K, tn), lambda i: (0, 0),
                                      pipeline_mode=pl.Buffered(buffer_count=1))
                b_spec = pl.BlockSpec((1, tn), lambda i: (0, 0),
                                      pipeline_mode=pl.Buffered(buffer_count=1))
            else:
                w_spec = pl.BlockSpec((K, tn), lambda i: (0, 0))
                b_spec = pl.BlockSpec((1, tn), lambda i: (0, 0))
            out_specs = pl.BlockSpec((tm, tn), lambda i: (i, 0))
            dims = ("parallel",)
        else:
            # M outer / N inner: x block index is constant over the inner sweep,
            # so x is DMA'd from HBM exactly once.
            grid = (num_m, num_n)
            x_spec = pl.BlockSpec((tm, K), lambda i, j: (i, 0))
            w_spec = pl.BlockSpec((K, tn), lambda i, j: (0, j))
            b_spec = pl.BlockSpec((1, tn), lambda i, j: (0, j))
            out_specs = pl.BlockSpec((tm, tn), lambda i, j: (i, j))
            dims = ("parallel", "parallel")
        return pl.pallas_call(
            kernel,
            out_shape=jax.ShapeDtypeStruct((M, N_pad), out_dtype),
            grid_spec=pltpu.PrefetchScalarGridSpec(
                num_scalar_prefetch=0,
                grid=grid,
                in_specs=[x_spec, w_spec, b_spec],
                out_specs=out_specs,
            ),
            compiler_params=pltpu.CompilerParams(
                dimension_semantics=dims,
                vmem_limit_bytes=int(vmem_limit),
            ),
            cost_estimate=cost,
        )

    if num_n == 1 and w_bufs == 1:
        try:
            out = make_call(True)(x2, w_t, b2)
        except Exception:
            # Portability fallback if Buffered(1) is rejected by this jax build.
            out = make_call(False)(x2, w_t, b2)
    else:
        out = make_call(False)(x2, w_t, b2)

    if not full_output and N_pad != n_out:
        out = out[:, :n_out]           # only pays a copy when N needed padding
    new_last = N_pad if full_output else n_out
    return out.reshape(orig_shape[:-1] + (new_last,))


def init_siren_params(key, input_size, output_size, w_std):
    """Deterministic stand-in for nn.Linear + uniform_(-w_std, w_std)."""
    kw, kb = jax.random.split(key)
    weight = jax.random.uniform(
        kw, (output_size, input_size), jnp.float32, minval=-w_std, maxval=w_std)
    bias = jax.random.uniform(
        kb, (output_size,), jnp.float32, minval=-w_std, maxval=w_std)
    return weight, bias


if __name__ == "__main__":
    key = jax.random.PRNGKey(0)
    k_x, k_p = jax.random.split(key)

    batch = 16
    input_size = 32
    output_size = 64          # not a multiple of 128: exercises N padding + slice
    w_std = 1.0 / input_size

    x = jax.random.normal(k_x, (batch, input_size), jnp.float32)
    weight, bias = init_siren_params(k_p, input_size, output_size, w_std)
    ref = x @ weight.T + bias

    # f32 params: tight check of the kernel path (module default: Identity).
    w32, b32, n_out = prepare_siren_params(weight, bias, dtype=jnp.float32)
    out = jax.block_until_ready(siren_forward(x, w32, b32, n_out))
    assert out.shape == (batch, output_size), out.shape
    assert jnp.allclose(out, ref, atol=1e-5, rtol=1e-5), "identity mismatch"

    # Sine activation (canonical SIREN usage).
    out_sin = jax.block_until_ready(
        siren_forward(x, w32, b32, n_out, activation="sine"))
    assert jnp.allclose(out_sin, jnp.sin(ref), atol=1e-5, rtol=1e-5), "sine mismatch"

    # Default bf16 weight storage/compute (f32 MXU accumulation + f32 epilogue).
    w16, b16, _ = prepare_siren_params(weight, bias)   # dtype defaults to bf16
    out16 = jax.block_until_ready(
        siren_forward(x, w16, b16, n_out, activation="sine"))
    assert jnp.allclose(out16, jnp.sin(ref), atol=3e-2, rtol=3e-2), "bf16 mismatch"

    # bf16 x as well (halves the HBM read of the streamed operand).
    out16x = jax.block_until_ready(
        siren_forward(x.astype(jnp.bfloat16), w16, b16, n_out))
    assert jnp.allclose(out16x, ref, atol=3e-2, rtol=3e-2), "bf16-x mismatch"

    print("KERNEL_OK")
</pallas_src>

<mosaic_0001>
module attributes {stable_mosaic.version = 11 : i64} {
  func.func @_siren_kernel(%arg0: i32, %arg1: memref<16x32xf32, #tpu.memory_space<vmem>>, %arg2: memref<32x128xf32, #tpu.memory_space<vmem>>, %arg3: memref<1x128xf32, #tpu.memory_space<vmem>>, %arg4: memref<16x128xf32, #tpu.memory_space<vmem>>) attributes {dimension_semantics = [#tpu.dimension_semantics<parallel>], iteration_bounds = array<i64: 1>, scalar_prefetch = 0 : i64, scratch_operands = 0 : i64, tpu.core_type = #tpu.core_type<tc>, window_params = [{transform_indices = @transform_0, window_bounds = array<i64: 16, 32>}, {pipeline_mode = #tpu.pipeline_mode<synchronous>, transform_indices = @transform_1, window_bounds = array<i64: 32, 128>}, {pipeline_mode = #tpu.pipeline_mode<synchronous>, transform_indices = @transform_2, window_bounds = array<i64: 1, 128>}, {transform_indices = @transform_3, window_bounds = array<i64: 16, 128>}]} {
    %c0 = arith.constant 0 : index
    %c0_0 = arith.constant 0 : index
    %0 = vector.load %arg1[%c0, %c0_0] : memref<16x32xf32, #tpu.memory_space<vmem>>, vector<16x32xf32>
    %c0_1 = arith.constant 0 : index
    %c0_2 = arith.constant 0 : index
    %1 = vector.load %arg2[%c0_1, %c0_2] : memref<32x128xf32, #tpu.memory_space<vmem>>, vector<32x128xf32>
    %cst = arith.constant dense<0.000000e+00> : vector<16x128xf32>
    %2 = tpu.matmul %0, %1, %cst {dimension_numbers = #tpu.dot_dimension_numbers<[1], [0], [0], [1], [0, 0, 1, 1], [], []>} : vector<16x32xf32>, vector<32x128xf32>, vector<16x128xf32> -> vector<16x128xf32>
    %c0_3 = arith.constant 0 : index
    %c0_4 = arith.constant 0 : index
    %3 = vector.load %arg3[%c0_3, %c0_4] : memref<1x128xf32, #tpu.memory_space<vmem>>, vector<1x128xf32>
    %4 = vector.broadcast %3 : vector<1x128xf32> to vector<16x128xf32>
    %5 = arith.addf %2, %4 : vector<16x128xf32>
    %c0_5 = arith.constant 0 : index
    %c0_6 = arith.constant 0 : index
    %6 = vector.load %arg4[%c0_5, %c0_6] : memref<16x128xf32, #tpu.memory_space<vmem>>, vector<16x128xf32>
    tpu.vector_store %arg4[%c0_5, %c0_6], %5 {strides = array<i32>} : memref<16x128xf32, #tpu.memory_space<vmem>>, vector<16x128xf32>,
    return
  }
  func.func @transform_0(%arg0: i32) -> (i32, i32) {
    %c0_i32 = arith.constant 0 : i32
    %c0_i32_0 = arith.constant 0 : i32
    return %arg0, %c0_i32 : i32, i32
  }
  func.func @transform_1(%arg0: i32) -> (i32, i32) {
    %c0_i32 = arith.constant 0 : i32
    %c0_i32_0 = arith.constant 0 : i32
    %c0_i32_1 = arith.constant 0 : i32
    return %c0_i32, %c0_i32_0 : i32, i32
  }
  func.func @transform_2(%arg0: i32) -> (i32, i32) {
    %c0_i32 = arith.constant 0 : i32
    %c0_i32_0 = arith.constant 0 : i32
    %c0_i32_1 = arith.constant 0 : i32
    return %c0_i32, %c0_i32_0 : i32, i32
  }
  func.func @transform_3(%arg0: i32) -> (i32, i32) {
    %c0_i32 = arith.constant 0 : i32
    %c0_i32_0 = arith.constant 0 : i32
    return %arg0, %c0_i32 : i32, i32
  }
}

module attributes {stable_mosaic.version = 11 : i64} {
  func.func @_siren_kernel(%arg0: i32, %arg1: memref<16x32xf32, #tpu.memory_space<vmem>>, %arg2: memref<32x128xf32, #tpu.memory_space<vmem>>, %arg3: memref<1x128xf32, #tpu.memory_space<vmem>>, %arg4: memref<16x128xf32, #tpu.memory_space<vmem>>) attributes {dimension_semantics = [#tpu.dimension_semantics<parallel>], iteration_bounds = array<i64: 1>, scalar_prefetch = 0 : i64, scratch_operands = 0 : i64, tpu.core_type = #tpu.core_type<tc>, window_params = [{transform_indices = @transform_0, window_bounds = array<i64: 16, 32>}, {pipeline_mode = #tpu.pipeline_mode<synchronous>, transform_indices = @transform_1, window_bounds = array<i64: 32, 128>}, {pipeline_mode = #tpu.pipeline_mode<synchronous>, transform_indices = @transform_2, window_bounds = array<i64: 1, 128>}, {transform_indices = @transform_3, window_bounds = array<i64: 16, 128>}]} {
    %c0 = arith.constant 0 : index
    %c0_0 = arith.constant 0 : index
    %0 = vector.load %arg1[%c0, %c0_0] : memref<16x32xf32, #tpu.memory_space<vmem>>, vector<16x32xf32>
    %c0_1 = arith.constant 0 : index
    %c0_2 = arith.constant 0 : index
    %1 = vector.load %arg2[%c0_1, %c0_2] : memref<32x128xf32, #tpu.memory_space<vmem>>, vector<32x128xf32>
    %cst = arith.constant dense<0.000000e+00> : vector<16x128xf32>
    %2 = tpu.matmul %0, %1, %cst {dimension_numbers = #tpu.dot_dimension_numbers<[1], [0], [0], [1], [0, 0, 1, 1], [], []>} : vector<16x32xf32>, vector<32x128xf32>, vector<16x128xf32> -> vector<16x128xf32>
    %c0_3 = arith.constant 0 : index
    %c0_4 = arith.constant 0 : index
    %3 = vector.load %arg3[%c0_3, %c0_4] : memref<1x128xf32, #tpu.memory_space<vmem>>, vector<1x128xf32>
    %4 = vector.broadcast %3 : vector<1x128xf32> to vector<16x128xf32>
    %5 = arith.addf %2, %4 : vector<16x128xf32>
    %c0_5 = arith.constant 0 : index
    %c0_6 = arith.constant 0 : index
    %6 = vector.load %arg4[%c0_5, %c0_6] : memref<16x128xf32, #tpu.memory_space<vmem>>, vector<16x128xf32>
    tpu.vector_store %arg4[%c0_5, %c0_6], %5 {strides = array<i32>} : memref<16x128xf32, #tpu.memory_space<vmem>>, vector<16x128xf32>,
    return
  }
  func.func @transform_0(%arg0: i32) -> (i32, i32) {
    %c0_i32 = arith.constant 0 : i32
    %c0_i32_0 = arith.constant 0 : i32
    return %arg0, %c0_i32 : i32, i32
  }
  func.func @transform_1(%arg0: i32) -> (i32, i32) {
    %c0_i32 = arith.constant 0 : i32
    %c0_i32_0 = arith.constant 0 : i32
    %c0_i32_1 = arith.constant 0 : i32
    return %c0_i32, %c0_i32_0 : i32, i32
  }
  func.func @transform_2(%arg0: i32) -> (i32, i32) {
    %c0_i32 = arith.constant 0 : i32
    %c0_i32_0 = arith.constant 0 : i32
    %c0_i32_1 = arith.constant 0 : i32
    return %c0_i32, %c0_i32_0 : i32, i32
  }
  func.func @transform_3(%arg0: i32) -> (i32, i32) {
    %c0_i32 = arith.constant 0 : i32
    %c0_i32_0 = arith.constant 0 : i32
    return %arg0, %c0_i32 : i32, i32
  }
}

</mosaic_0001>

<llo_original>
// kernel: tpu_custom_call.1
$region0: #{tpu_custom_call.1}
  #allocation0 [shape = 'u32[]', space=smem, size = 0x4, offset = 0x4, fixed_abs, tag = 'smem constant byte address 0x4 - core index']
  #allocation1 [shape = 'u32[144,128]{1,0:T(1,128)}', space=vmem, size = 0x12000, scoped, tag = 'internal scratch']
  %s0 = inlined_call_operand.hbm [shape: f32[16,32], index: 0, kind: input, shape index: {}]
  %s1 = inlined_call_operand.hbm [shape: f32[32,128], index: 1, kind: input, shape index: {}]
  %s2 = inlined_call_operand.vmem [shape: f32[1,128], index: 2, kind: input, shape index: {}]
  %s3 = inlined_call_operand.hbm [shape: f32[16,128], index: 3, kind: output, shape index: {}]
  %s4 = sld [smem:[#allocation0]]
  $region30: #{tpu_custom_call.1} parent=0
    _
  %s6 = ssub.s32 1, %s4
  %s7 = scalar_select 0, %s6, %s4
  $region1: #{tpu_custom_call.1} parent=0
    #allocation2 [shape = 'u8[8192]{0}', space=vmem, size = 0x2000, scoped, tag = 'input window, operand 0, single buffered']
    #allocation3 [shape = 's32[1]{0}', space=sflag, size = 0x4, scoped, tag = 'scoped memory for tpu_custom_call.1']
    #allocation4 [shape = 's32[1]{0}', space=sflag, size = 0x4, scoped, tag = 'scoped memory for tpu_custom_call.1']
    #allocation5 [shape = 'u8[16384]{0}', space=vmem, size = 0x4000, scoped, tag = 'input window, operand 1, single buffered']
    #allocation6 [shape = 's32[1]{0}', space=sflag, size = 0x4, scoped, tag = 'scoped memory for tpu_custom_call.1']
    #allocation7 [shape = 'u8[8192]{0}', space=vmem, size = 0x2000, scoped, tag = 'output window, operand 0, single buffered']
    %8 = vsyncpa [#allocation3], 0
    %9 = vsyncpa [#allocation6], 0
    %10 = vsyncpa [#allocation4], 0
    // Predicated region
    $region2: #{tpu_custom_call.1} parent=1 // pred_check
      _
    $region3: #{tpu_custom_call.1} parent=1 // pred_check_branch
      %12 = sbr.rel (0) target = $region5
    $region4: #{tpu_custom_call.1} parent=1 // pred_region
      %s14 = ssub.s32 256, 256
      %15 = vsyncadd [#allocation3], %s14
      %s16 = sshll.u32 [#allocation2], 4
      %s17 = int_to_ptr.vmem [resolvable:$true] %s16
      %22 = dma.hbm_to_vmem [thread:$0]  %s0, 256, %s17, [#allocation3], 128, 128, 8
    $region5: #{tpu_custom_call.1} parent=1 // pred_fallthru
      _
    // Predicated region
    $region6: #{tpu_custom_call.1} parent=1 // pred_check
      _
    $region7: #{tpu_custom_call.1} parent=1 // pred_check_branch
      %24 = sbr.rel (0) target = $region9
    $region8: #{tpu_custom_call.1} parent=1 // pred_region
      %s26 = ssub.s32 512, 512
      %27 = vsyncadd [#allocation6], %s26
      %s28 = sshll.u32 [#allocation5], 4
      %s29 = int_to_ptr.vmem [resolvable:$true] %s28
      %34 = dma.hbm_to_vmem [thread:$0]  %s1, 512, %s29, [#allocation6], 128, 128, 8
    $region9: #{tpu_custom_call.1} parent=1 // pred_fallthru
      _
    // Predicated region
    $region10: #{tpu_custom_call.1} parent=1 // pred_check
      _
    $region11: #{tpu_custom_call.1} parent=1 // pred_check_branch
      %36 = sbr.rel (0) target = $region13
    $region12: #{tpu_custom_call.1} parent=1 // pred_region
      _
    $region13: #{tpu_custom_call.1} parent=1 // pred_fallthru
      _
    // Predicated region
    $region14: #{tpu_custom_call.1} parent=1 // pred_check
      _
    $region15: #{tpu_custom_call.1} parent=1 // pred_check_branch
      %38 = sbr.rel (0) target = $region17
    $region16: #{tpu_custom_call.1} parent=1 // pred_region
      %39 = dma.done [#allocation3], 256
    $region17: #{tpu_custom_call.1} parent=1 // pred_fallthru
      _
    // Predicated region
    $region18: #{tpu_custom_call.1} parent=1 // pred_check
      _
    $region19: #{tpu_custom_call.1} parent=1 // pred_check_branch
      %41 = sbr.rel (0) target = $region21
    $region20: #{tpu_custom_call.1} parent=1 // pred_region
      %42 = dma.done [#allocation6], 512
    $region21: #{tpu_custom_call.1} parent=1 // pred_fallthru
      _
    %v43 = vld [vmem:[#allocation2] sm:$0xff]
    %v44 = vld [vmem:[#allocation2 + $0x8] sm:$0xff]
    %v45 = vld [vmem:[#allocation5] sm:$0xff]
    %v46 = vld [vmem:[#allocation5 + $0x8] sm:$0xff]
    %v47 = vld [vmem:[#allocation5 + $0x10] sm:$0xff]
    %v48 = vld [vmem:[#allocation5 + $0x18] sm:$0xff]
    %v49 = vld [vmem:[%s2] sm:$0x1]
    %v51 = vlaneseq
    %v52 = vshrl.u32 %v51, 7
    %v53 = vsub.s32 0, %v52
    %v54 = vrot.slane %v49, %v53
    %vm56 = vcmask 261120
    %v58 = vsel %vm56, %v43, 0
    %v61 = vsel %vm56, %v44, 0
    %63 = vmatprep.subr.mxu0 0.0
    %64 = vmatpush1.msra.mxu0 0.0
    %65 = vmatprep.subr.mxu0 0.0
    %66 = vmatpush1.msra.mxu0 0.0
    %67 = vmatprep.subr.mxu0 0.0
    %68 = vmatpush1.msra.mxu0 0.0
    %69 = vmatprep.subr.mxu0 0.0
    %70 = vmatpush1.msra.mxu0 0.0
    %71 = vmatprep.subr.mxu0 0.0
    %72 = vmatpush1.msra.mxu0 0.0
    %73 = vmatprep.subr.mxu0 0.0
    %74 = vmatpush1.msra.mxu0 0.0
    %75 = vmatprep.subr.mxu0 0.0
    %76 = vmatpush1.msra.mxu0 0.0
    %77 = vmatprep.subr.mxu0 0.0
    %78 = vmatpush1.msra.mxu0 0.0
    %79 = vmatprep.subr.mxu0 0.0
    %80 = vmatpush1.msra.mxu0 0.0
    %81 = vmatprep.subr.mxu0 0.0
    %82 = vmatpush1.msra.mxu0 0.0
    %83 = vmatprep.subr.mxu0 0.0
    %84 = vmatpush1.msra.mxu0 0.0
    %85 = vmatprep.subr.mxu0 0.0
    %86 = vmatpush1.msra.mxu0 0.0
    %87 = vmatprep.subr.mxu0 0.0
    %88 = vmatpush1.msra.mxu0 %v48
    %89 = vmatprep.subr.mxu0 0.0
    %90 = vmatpush1.msra.mxu0 %v47
    %91 = vmatprep.subr.mxu0 0.0
    %92 = vmatpush1.msra.mxu0 %v46
    %93 = vmatprep.subr.mxu0 0.0
    %94 = vmatpush1.msra.mxu0 %v45
    %95 = vmatprep.subr.mxu0 0.0
    %96 = vmatpush2.msra.mxu0 0.0
    %97 = vmatprep.subr.mxu0 0.0
    %98 = vmatpush2.msra.mxu0 0.0
    %99 = vmatprep.subr.mxu0 0.0
    %100 = vmatpush2.msra.mxu0 0.0
    %101 = vmatprep.subr.mxu0 0.0
    %102 = vmatpush2.msra.mxu0 0.0
    %103 = vmatprep.subr.mxu0 0.0
    %104 = vmatpush2.msra.mxu0 0.0
    %105 = vmatprep.subr.mxu0 0.0
    %106 = vmatpush2.msra.mxu0 0.0
    %107 = vmatprep.subr.mxu0 0.0
    %108 = vmatpush2.msra.mxu0 0.0
    %109 = vmatprep.subr.mxu0 0.0
    %110 = vmatpush2.msra.mxu0 0.0
    %111 = vmatprep.subr.mxu0 0.0
    %112 = vmatpush2.msra.mxu0 0.0
    %113 = vmatprep.subr.mxu0 0.0
    %114 = vmatpush2.msra.mxu0 0.0
    %115 = vmatprep.subr.mxu0 0.0
    %116 = vmatpush2.msra.mxu0 0.0
    %117 = vmatprep.subr.mxu0 0.0
    %118 = vmatpush2.msra.mxu0 0.0
    %119 = vmatprep.subr.mxu0 0.0
    %120 = vmatpush2.msra.mxu0 0.0
    %121 = vmatprep.subr.mxu0 0.0
    %122 = vmatpush2.msra.mxu0 0.0
    %123 = vmatprep.subr.mxu0 0.0
    %124 = vmatpush2.msra.mxu0 0.0
    %125 = vmatprep.subr.mxu0 0.0
    %126 = vmatpush2.msra.mxu0 0.0
    %127 = vmatprep.mubr.f32.mxu0 0.0
    %128 = vmatmul.mubr.f32.gmra.mxu0 %v58
    %v129 = vpop.f32.mrf.mxu0
    %v130 = vadd.f32 %v54, %v129
    %v131 = vpop.f32.mrf.mxu0
    %132 = vmatprep.mubr.f32.mxu0 0.0
    %133 = vmatmul.mubr.f32.gmra.mxu0 %v61
    %v134 = vpop.f32.mrf.mxu0
    %v135 = vadd.f32 %v54, %v134
    %v136 = vpop.f32.mrf.mxu0
    %137 = vdwg.mxu0
    %138 = vst [vmem:[#allocation7] sm:$0xff] %v130
    %139 = vst [vmem:[#allocation7 + $0x8] sm:$0xff] %v135
    // Predicated region
    $region22: #{tpu_custom_call.1} parent=1 // pred_check
      _
    $region23: #{tpu_custom_call.1} parent=1 // pred_check_branch
      %141 = sbr.rel (0) target = $region25
    $region24: #{tpu_custom_call.1} parent=1 // pred_region
      %s143 = ssub.s32 256, 256
      %144 = vsyncadd [#allocation4], %s143
      %s145 = sshll.u32 [#allocation7], 4
      %s146 = int_to_ptr.vmem [resolvable:$true] %s145
      %151 = dma.vmem_to_hbm [thread:$0]  %s146, 256, %s3, [#allocation4], 128, 128, 8
    $region25: #{tpu_custom_call.1} parent=1 // pred_fallthru
      _
    // Predicated region
    $region26: #{tpu_custom_call.1} parent=1 // pred_check
      _
    $region27: #{tpu_custom_call.1} parent=1 // pred_check_branch
      %153 = sbr.rel (0) target = $region29
    $region28: #{tpu_custom_call.1} parent=1 // pred_region
      %154 = dma.done [#allocation4], 256
    $region29: #{tpu_custom_call.1} parent=1 // pred_fallthru
      _
    %155 = vsyncpa [#allocation3], 1
    %156 = vsyncpa [#allocation6], 1
    %157 = vsyncpa [#allocation4], 1

// kernel: tpu_custom_call.1
$region0: #{tpu_custom_call.1}
  #allocation0 [shape = 'u32[]', space=smem, size = 0x4, offset = 0x4, fixed_abs, tag = 'smem constant byte address 0x4 - core index']
  #allocation1 [shape = 'u32[144,128]{1,0:T(1,128)}', space=vmem, size = 0x12000, scoped, tag = 'internal scratch']
  %s0 = inlined_call_operand.hbm [shape: f32[16,32], index: 0, kind: input, shape index: {}]
  %s1 = inlined_call_operand.hbm [shape: f32[32,128], index: 1, kind: input, shape index: {}]
  %s2 = inlined_call_operand.vmem [shape: f32[1,128], index: 2, kind: input, shape index: {}]
  %s3 = inlined_call_operand.hbm [shape: f32[16,128], index: 3, kind: output, shape index: {}]
  %s4 = sld [smem:[#allocation0]]
  $region30: #{tpu_custom_call.1} parent=0
    _
  %s6 = ssub.s32 1, %s4
  %s7 = scalar_select 0, %s6, %s4
  $region1: #{tpu_custom_call.1} parent=0
    #allocation2 [shape = 'u8[8192]{0}', space=vmem, size = 0x2000, scoped, tag = 'input window, operand 0, single buffered']
    #allocation3 [shape = 's32[1]{0}', space=sflag, size = 0x4, scoped, tag = 'scoped memory for tpu_custom_call.1']
    #allocation4 [shape = 's32[1]{0}', space=sflag, size = 0x4, scoped, tag = 'scoped memory for tpu_custom_call.1']
    #allocation5 [shape = 'u8[16384]{0}', space=vmem, size = 0x4000, scoped, tag = 'input window, operand 1, single buffered']
    #allocation6 [shape = 's32[1]{0}', space=sflag, size = 0x4, scoped, tag = 'scoped memory for tpu_custom_call.1']
    #allocation7 [shape = 'u8[8192]{0}', space=vmem, size = 0x2000, scoped, tag = 'output window, operand 0, single buffered']
    %8 = vsyncpa [#allocation3], 0
    %9 = vsyncpa [#allocation6], 0
    %10 = vsyncpa [#allocation4], 0
    // Predicated region
    $region2: #{tpu_custom_call.1} parent=1 // pred_check
      _
    $region3: #{tpu_custom_call.1} parent=1 // pred_check_branch
      %12 = sbr.rel (0) target = $region5
    $region4: #{tpu_custom_call.1} parent=1 // pred_region
      %s14 = ssub.s32 256, 256
      %15 = vsyncadd [#allocation3], %s14
      %s16 = sshll.u32 [#allocation2], 4
      %s17 = int_to_ptr.vmem [resolvable:$true] %s16
      %22 = dma.hbm_to_vmem [thread:$0]  %s0, 256, %s17, [#allocation3], 128, 128, 8
    $region5: #{tpu_custom_call.1} parent=1 // pred_fallthru
      _
    // Predicated region
    $region6: #{tpu_custom_call.1} parent=1 // pred_check
      _
    $region7: #{tpu_custom_call.1} parent=1 // pred_check_branch
      %24 = sbr.rel (0) target = $region9
    $region8: #{tpu_custom_call.1} parent=1 // pred_region
      %s26 = ssub.s32 512, 512
      %27 = vsyncadd [#allocation6], %s26
      %s28 = sshll.u32 [#allocation5], 4
      %s29 = int_to_ptr.vmem [resolvable:$true] %s28
      %34 = dma.hbm_to_vmem [thread:$0]  %s1, 512, %s29, [#allocation6], 128, 128, 8
    $region9: #{tpu_custom_call.1} parent=1 // pred_fallthru
      _
    // Predicated region
    $region10: #{tpu_custom_call.1} parent=1 // pred_check
      _
    $region11: #{tpu_custom_call.1} parent=1 // pred_check_branch
      %36 = sbr.rel (0) target = $region13
    $region12: #{tpu_custom_call.1} parent=1 // pred_region
      _
    $region13: #{tpu_custom_call.1} parent=1 // pred_fallthru
      _
    // Predicated region
    $region14: #{tpu_custom_call.1} parent=1 // pred_check
      _
    $region15: #{tpu_custom_call.1} parent=1 // pred_check_branch
      %38 = sbr.rel (0) target = $region17
    $region16: #{tpu_custom_call.1} parent=1 // pred_region
      %39 = dma.done [#allocation3], 256
    $region17: #{tpu_custom_call.1} parent=1 // pred_fallthru
      _
    // Predicated region
    $region18: #{tpu_custom_call.1} parent=1 // pred_check
      _
    $region19: #{tpu_custom_call.1} parent=1 // pred_check_branch
      %41 = sbr.rel (0) target = $region21
    $region20: #{tpu_custom_call.1} parent=1 // pred_region
      %42 = dma.done [#allocation6], 512
    $region21: #{tpu_custom_call.1} parent=1 // pred_fallthru
      _
    %v43 = vld [vmem:[#allocation2] sm:$0xff]
    %v44 = vld [vmem:[#allocation2 + $0x8] sm:$0xff]
    %v45 = vld [vmem:[#allocation5] sm:$0xff]
    %v46 = vld [vmem:[#allocation5 + $0x8] sm:$0xff]
    %v47 = vld [vmem:[#allocation5 + $0x10] sm:$0xff]
    %v48 = vld [vmem:[#allocation5 + $0x18] sm:$0xff]
    %v49 = vld [vmem:[%s2] sm:$0x1]
    %v51 = vlaneseq
    %v52 = vshrl.u32 %v51, 7
    %v53 = vsub.s32 0, %v52
    %v54 = vrot.slane %v49, %v53
    %vm56 = vcmask 261120
    %v58 = vsel %vm56, %v43, 0
    %v61 = vsel %vm56, %v44, 0
    %63 = vmatprep.subr.mxu0 0.0
    %64 = vmatpush1.msra.mxu0 0.0
    %65 = vmatprep.subr.mxu0 0.0
    %66 = vmatpush1.msra.mxu0 0.0
    %67 = vmatprep.subr.mxu0 0.0
    %68 = vmatpush1.msra.mxu0 0.0
    %69 = vmatprep.subr.mxu0 0.0
    %70 = vmatpush1.msra.mxu0 0.0
    %71 = vmatprep.subr.mxu0 0.0
    %72 = vmatpush1.msra.mxu0 0.0
    %73 = vmatprep.subr.mxu0 0.0
    %74 = vmatpush1.msra.mxu0 0.0
    %75 = vmatprep.subr.mxu0 0.0
    %76 = vmatpush1.msra.mxu0 0.0
    %77 = vmatprep.subr.mxu0 0.0
    %78 = vmatpush1.msra.mxu0 0.0
    %79 = vmatprep.subr.mxu0 0.0
    %80 = vmatpush1.msra.mxu0 0.0
    %81 = vmatprep.subr.mxu0 0.0
    %82 = vmatpush1.msra.mxu0 0.0
    %83 = vmatprep.subr.mxu0 0.0
    %84 = vmatpush1.msra.mxu0 0.0
    %85 = vmatprep.subr.mxu0 0.0
    %86 = vmatpush1.msra.mxu0 0.0
    %87 = vmatprep.subr.mxu0 0.0
    %88 = vmatpush1.msra.mxu0 %v48
    %89 = vmatprep.subr.mxu0 0.0
    %90 = vmatpush1.msra.mxu0 %v47
    %91 = vmatprep.subr.mxu0 0.0
    %92 = vmatpush1.msra.mxu0 %v46
    %93 = vmatprep.subr.mxu0 0.0
    %94 = vmatpush1.msra.mxu0 %v45
    %95 = vmatprep.subr.mxu0 0.0
    %96 = vmatpush2.msra.mxu0 0.0
    %97 = vmatprep.subr.mxu0 0.0
    %98 = vmatpush2.msra.mxu0 0.0
    %99 = vmatprep.subr.mxu0 0.0
    %100 = vmatpush2.msra.mxu0 0.0
    %101 = vmatprep.subr.mxu0 0.0
    %102 = vmatpush2.msra.mxu0 0.0
    %103 = vmatprep.subr.mxu0 0.0
    %104 = vmatpush2.msra.mxu0 0.0
    %105 = vmatprep.subr.mxu0 0.0
    %106 = vmatpush2.msra.mxu0 0.0
    %107 = vmatprep.subr.mxu0 0.0
    %108 = vmatpush2.msra.mxu0 0.0
    %109 = vmatprep.subr.mxu0 0.0
    %110 = vmatpush2.msra.mxu0 0.0
    %111 = vmatprep.subr.mxu0 0.0
    %112 = vmatpush2.msra.mxu0 0.0
    %113 = vmatprep.subr.mxu0 0.0
    %114 = vmatpush2.msra.mxu0 0.0
    %115 = vmatprep.subr.mxu0 0.0
    %116 = vmatpush2.msra.mxu0 0.0
    %117 = vmatprep.subr.mxu0 0.0
    %118 = vmatpush2.msra.mxu0 0.0
    %119 = vmatprep.subr.mxu0 0.0
    %120 = vmatpush2.msra.mxu0 0.0
    %121 = vmatprep.subr.mxu0 0.0
    %122 = vmatpush2.msra.mxu0 0.0
    %123 = vmatprep.subr.mxu0 0.0
    %124 = vmatpush2.msra.mxu0 0.0
    %125 = vmatprep.subr.mxu0 0.0
    %126 = vmatpush2.msra.mxu0 0.0
    %127 = vmatprep.mubr.f32.mxu0 0.0
    %128 = vmatmul.mubr.f32.gmra.mxu0 %v58
    %v129 = vpop.f32.mrf.mxu0
    %v130 = vadd.f32 %v54, %v129
    %v131 = vpop.f32.mrf.mxu0
    %132 = vmatprep.mubr.f32.mxu0 0.0
    %133 = vmatmul.mubr.f32.gmra.mxu0 %v61
    %v134 = vpop.f32.mrf.mxu0
    %v135 = vadd.f32 %v54, %v134
    %v136 = vpop.f32.mrf.mxu0
    %137 = vdwg.mxu0
    %138 = vst [vmem:[#allocation7] sm:$0xff] %v130
    %139 = vst [vmem:[#allocation7 + $0x8] sm:$0xff] %v135
    // Predicated region
    $region22: #{tpu_custom_call.1} parent=1 // pred_check
      _
    $region23: #{tpu_custom_call.1} parent=1 // pred_check_branch
      %141 = sbr.rel (0) target = $region25
    $region24: #{tpu_custom_call.1} parent=1 // pred_region
      %s143 = ssub.s32 256, 256
      %144 = vsyncadd [#allocation4], %s143
      %s145 = sshll.u32 [#allocation7], 4
      %s146 = int_to_ptr.vmem [resolvable:$true] %s145
      %151 = dma.vmem_to_hbm [thread:$0]  %s146, 256, %s3, [#allocation4], 128, 128, 8
    $region25: #{tpu_custom_call.1} parent=1 // pred_fallthru
      _
    // Predicated region
    $region26: #{tpu_custom_call.1} parent=1 // pred_check
      _
    $region27: #{tpu_custom_call.1} parent=1 // pred_check_branch
      %153 = sbr.rel (0) target = $region29
    $region28: #{tpu_custom_call.1} parent=1 // pred_region
      %154 = dma.done [#allocation4], 256
    $region29: #{tpu_custom_call.1} parent=1 // pred_fallthru
      _
    %155 = vsyncpa [#allocation3], 1
    %156 = vsyncpa [#allocation6], 1
    %157 = vsyncpa [#allocation4], 1

</llo_original>
